<compile_context>
chip_gen: v5e
topology: v5e:2x2
jax: 0.10.0
libtpu: 0.0.40
codegen_flags: <defaults>
</compile_context>

<pallas_src>
import functools

import jax
import jax.numpy as jnp
from jax import lax
from jax.experimental import pallas as pl
from jax.experimental.pallas import tpu as pltpu


def _log_sum_exp(x, axis):
    m = jnp.max(x, axis=axis, keepdims=True)
    return m + jnp.log(jnp.sum(jnp.exp(x - m), axis=axis, keepdims=True))


def _perm_kernel(la_t_ref, x_ref, out_ref, p_ref, *, n_iter):
    # la_t_ref: (TR, F, F)   transposed, noised, tau-scaled log-assignment la_t[r, m, f]
    # x_ref:    (TR, F, TN)  activation tile
    # out_ref:  (TR, F, TN)
    # p_ref:    (TR, F, F)   VMEM scratch: cached close-to-doubly-stochastic matrices

    # Sinkhorn only on the first N tile of each repetition block; result is
    # cached in VMEM scratch and reused for all remaining N tiles.
    @pl.when(pl.program_id(1) == 0)
    def _():
        la = la_t_ref[...]

        def body(_, la):
            # Original loop (on la[f, m]): row-norm over m, then col-norm over f.
            # On the transposed la_t[m, f] those become axis=-2 then axis=-1.
            la = la - _log_sum_exp(la, axis=-2)
            la = la - _log_sum_exp(la, axis=-1)
            return la

        la = lax.fori_loop(0, n_iter, body, la)
        p_ref[...] = jnp.exp(la)

    # out[r, m, n] = sum_f p_t[r, m, f] * x[r, f, n]  (contraction over p's last dim)
    out = lax.dot_general(
        p_ref[...].astype(x_ref.dtype),
        x_ref[...],
        dimension_numbers=(((2,), (1,)), ((0,), (0,))),
        preferred_element_type=jnp.float32,
    )
    out_ref[...] = out.astype(out_ref.dtype)


def permutation_layer_forward_rfn(x_rfn, log_alpha_t, *, iterations=20, tn_max=2048):
    """Core Pallas call on the transpose-free layout.

    x_rfn:       (R, F, N) activations, N = B*L*C.
    log_alpha_t: (R, F, F) transposed log-assignment (la_t[r, m, f]), already
                 Gumbel-noised and tau-scaled, float32.
    Returns (R, F, N) in x_rfn.dtype.
    """
    R, F, N = x_rfn.shape
    bytes_per = jnp.dtype(x_rfn.dtype).itemsize

    # Lane-dense N tile: a multiple of 128 (or the full N when it is small).
    tn = N if N <= tn_max else tn_max
    num_n = pl.cdiv(N, tn)

    # Collapse R into one batched grid step only when the problem is a single
    # small N tile; otherwise keep R as the outer parallel axis so the cached
    # Sinkhorn result is amortized over streamed N tiles (and v7x can split the
    # R axis across its two TensorCores).
    if num_n == 1 and R * F * tn * bytes_per <= (2 << 20):
        tr = R
    else:
        tr = 1
    num_r = R // tr  # tr is either 1 or R

    kernel = functools.partial(_perm_kernel, n_iter=iterations)
    return pl.pallas_call(
        kernel,
        out_shape=jax.ShapeDtypeStruct((R, F, N), x_rfn.dtype),
        grid_spec=pltpu.PrefetchScalarGridSpec(
            num_scalar_prefetch=0,
            grid=(num_r, num_n),
            in_specs=[
                pl.BlockSpec((tr, F, F), lambda r, n: (r, 0, 0)),
                pl.BlockSpec((tr, F, tn), lambda r, n: (r, 0, n)),
            ],
            out_specs=pl.BlockSpec((tr, F, tn), lambda r, n: (r, 0, n)),
            scratch_shapes=[pltpu.VMEM((tr, F, F), jnp.float32)],
        ),
        compiler_params=pltpu.CompilerParams(
            # R tiles are independent; N tiles carry the cached p in scratch.
            dimension_semantics=("parallel", "arbitrary"),
            # Explicit budget: tiles are sized so double-buffered in+out stays
            # far below 32 MiB, which is within physical VMEM on v5e/v6e/v7x.
            vmem_limit_bytes=32 * 1024 * 1024,
        ),
    )(log_alpha_t, x_rfn)


def permutation_layer_forward(x, perm_seed, key, tau=1.0, iterations=20):
    """PyTorch-interface wrapper.  x: (B, F, L, C, R); perm_seed: (F, F, R)."""
    B, F, L, C, R = x.shape
    N = B * L * C

    # Parameter prep (tiny, R*F*F elements): gumbel noise + tau scaling, then
    # transpose so the contraction dim f is last (no XLU transpose in-kernel).
    la = jnp.transpose(perm_seed, (2, 0, 1))                     # (R, F, M)
    eps = 1e-20
    u = jax.random.uniform(key, la.shape, dtype=jnp.float32)
    gumbel = -jnp.log(-jnp.log(u + eps) + eps)
    la_t = jnp.transpose((la + gumbel) / tau, (0, 2, 1))         # (R, M, F)

    # NOTE: in production keep activations in (R, F, N) layout end-to-end and
    # call permutation_layer_forward_rfn directly -- these two HBM transposes
    # roughly triple HBM traffic for this bandwidth-bound op.
    x_rfn = jnp.transpose(x, (4, 1, 0, 2, 3)).reshape(R, F, N)
    out_rfn = permutation_layer_forward_rfn(x_rfn, la_t, iterations=iterations)
    out = out_rfn.reshape(R, F, B, L, C)
    return jnp.transpose(out, (2, 1, 3, 4, 0))


def _reference_forward(x, perm_seed, key, tau=1.0, iterations=20):
    """Pure-JAX reference mirroring the PyTorch training-mode forward."""
    la = jnp.transpose(perm_seed, (2, 0, 1))
    eps = 1e-20
    u = jax.random.uniform(key, la.shape, dtype=jnp.float32)
    la = (la + (-jnp.log(-jnp.log(u + eps) + eps))) / tau
    for _ in range(iterations):
        la = la - jax.scipy.special.logsumexp(la, axis=-1, keepdims=True)
        la = la - jax.scipy.special.logsumexp(la, axis=-2, keepdims=True)
    p = jnp.exp(la)                                   # (R, F, F)
    xp = jnp.transpose(x, (4, 1, 0, 2, 3))            # (R, F, B, L, C)
    out = jnp.einsum('rfm,rfblc->rmblc', p, xp)
    return jnp.transpose(out, (2, 1, 3, 4, 0))


if __name__ == "__main__":
    root_key = jax.random.PRNGKey(0)

    def run_case(B, F, L, C, R, iterations=20, tau=1.0, seed_offset=0):
        k = jax.random.fold_in(root_key, seed_offset)
        k_seed, k_x, k_gumbel = jax.random.split(k, 3)
        perm_seed = jax.random.uniform(k_seed, (F, F, R), dtype=jnp.float32)
        x = jax.random.normal(k_x, (B, F, L, C, R), dtype=jnp.float32)

        out = jax.block_until_ready(
            permutation_layer_forward(x, perm_seed, k_gumbel, tau=tau,
                                      iterations=iterations))
        ref = jax.block_until_ready(
            _reference_forward(x, perm_seed, k_gumbel, tau=tau,
                               iterations=iterations))

        assert out.shape == x.shape, (out.shape, x.shape)
        max_err = float(jnp.max(jnp.abs(out - ref)))
        assert jnp.allclose(out, ref, rtol=1e-4, atol=1e-4), max_err

    # Small config (N = 128): single N tile -> batched-R path (one grid step).
    run_case(B=2, F=16, L=8, C=8, R=4, seed_offset=0)
    # Larger N (N = 4096, two 2048-wide tiles): exercises the (R parallel,
    # N arbitrary) tiled path with the Sinkhorn result cached in VMEM scratch.
    run_case(B=4, F=16, L=32, C=32, R=4, seed_offset=1)

    print("KERNEL_OK")
</pallas_src>

<mosaic_0001>
module attributes {stable_mosaic.version = 11 : i64} {
  func.func @_perm_kernel(%arg0: i32, %arg1: i32, %arg2: memref<4x16x16xf32, #tpu.memory_space<vmem>>, %arg3: memref<4x16x128xf32, #tpu.memory_space<vmem>>, %arg4: memref<4x16x128xf32, #tpu.memory_space<vmem>>, %arg5: memref<4x16x16xf32, #tpu.memory_space<vmem>>) attributes {dimension_semantics = [#tpu.dimension_semantics<parallel>, #tpu.dimension_semantics<arbitrary>], iteration_bounds = array<i64: 1, 1>, scalar_prefetch = 0 : i64, scratch_operands = 1 : i64, tpu.core_type = #tpu.core_type<tc>, window_params = [{transform_indices = @transform_0, window_bounds = array<i64: 4, 16, 16>}, {transform_indices = @transform_1, window_bounds = array<i64: 4, 16, 128>}, {transform_indices = @transform_2, window_bounds = array<i64: 4, 16, 128>}]} {
    %c0_i32 = arith.constant 0 : i32
    %0 = arith.cmpi eq, %arg1, %c0_i32 : i32
    %1 = arith.extui %0 : i1 to i32
    %c0_i32_0 = arith.constant 0 : i32
    %2 = arith.cmpi ne, %1, %c0_i32_0 : i32
    scf.if %2 {
      %c0_9 = arith.constant 0 : index
      %c0_10 = arith.constant 0 : index
      %c0_11 = arith.constant 0 : index
      %7 = vector.load %arg2[%c0_9, %c0_10, %c0_11] : memref<4x16x16xf32, #tpu.memory_space<vmem>>, vector<4x16x16xf32>
      %c0_i32_12 = arith.constant 0 : i32
      %c20_i32 = arith.constant 20 : i32
      %8 = arith.addi %c0_i32_12, %c20_i32 : i32
      %c1_i32 = arith.constant 1 : i32
      %9 = scf.for %arg6 = %c0_i32_12 to %8 step %c1_i32 iter_args(%arg7 = %7) -> (vector<4x16x16xf32>)  : i32 {
        %cst_16 = arith.constant dense<0xFF800000> : vector<4x16xf32>
        %12 = vector.multi_reduction <maximumf>, %arg7, %cst_16 [1] : vector<4x16x16xf32> to vector<4x16xf32>
        %13 = vector.shape_cast %12 : vector<4x16xf32> to vector<4x1x16xf32>
        %14 = vector.broadcast %13 : vector<4x1x16xf32> to vector<4x16x16xf32>
        %15 = arith.subf %arg7, %14 : vector<4x16x16xf32>
        %16 = math.exp %15 : vector<4x16x16xf32>
        %cst_17 = arith.constant dense<0.000000e+00> : vector<4x16xf32>
        %17 = vector.multi_reduction <add>, %16, %cst_17 [1] : vector<4x16x16xf32> to vector<4x16xf32>
        %18 = vector.shape_cast %17 : vector<4x16xf32> to vector<4x1x16xf32>
        %19 = math.log %18 : vector<4x1x16xf32>
        %20 = arith.addf %13, %19 : vector<4x1x16xf32>
        %21 = vector.broadcast %20 : vector<4x1x16xf32> to vector<4x16x16xf32>
        %22 = arith.subf %arg7, %21 : vector<4x16x16xf32>
        %cst_18 = arith.constant dense<0xFF800000> : vector<4x16xf32>
        %23 = vector.multi_reduction <maximumf>, %22, %cst_18 [2] : vector<4x16x16xf32> to vector<4x16xf32>
        %24 = vector.shape_cast %23 : vector<4x16xf32> to vector<4x16x1xf32>
        %25 = vector.broadcast %24 : vector<4x16x1xf32> to vector<4x16x16xf32>
        %26 = arith.subf %22, %25 : vector<4x16x16xf32>
        %27 = math.exp %26 : vector<4x16x16xf32>
        %cst_19 = arith.constant dense<0.000000e+00> : vector<4x16xf32>
        %28 = vector.multi_reduction <add>, %27, %cst_19 [2] : vector<4x16x16xf32> to vector<4x16xf32>
        %29 = vector.shape_cast %28 : vector<4x16xf32> to vector<4x16x1xf32>
        %30 = math.log %29 : vector<4x16x1xf32>
        %31 = arith.addf %24, %30 : vector<4x16x1xf32>
        %32 = vector.broadcast %31 : vector<4x16x1xf32> to vector<4x16x16xf32>
        %33 = arith.subf %22, %32 : vector<4x16x16xf32>
        scf.yield %33 : vector<4x16x16xf32>
      }
      %10 = math.exp %9 : vector<4x16x16xf32>
      %c0_13 = arith.constant 0 : index
      %c0_14 = arith.constant 0 : index
      %c0_15 = arith.constant 0 : index
      %11 = vector.load %arg5[%c0_13, %c0_14, %c0_15] : memref<4x16x16xf32, #tpu.memory_space<vmem>>, vector<4x16x16xf32>
      tpu.vector_store %arg5[%c0_13, %c0_14, %c0_15], %10 {strides = array<i32>} : memref<4x16x16xf32, #tpu.memory_space<vmem>>, vector<4x16x16xf32>,
    } else {
    }
    %c0 = arith.constant 0 : index
    %c0_1 = arith.constant 0 : index
    %c0_2 = arith.constant 0 : index
    %3 = vector.load %arg5[%c0, %c0_1, %c0_2] : memref<4x16x16xf32, #tpu.memory_space<vmem>>, vector<4x16x16xf32>
    %c0_3 = arith.constant 0 : index
    %c0_4 = arith.constant 0 : index
    %c0_5 = arith.constant 0 : index
    %4 = vector.load %arg3[%c0_3, %c0_4, %c0_5] : memref<4x16x128xf32, #tpu.memory_space<vmem>>, vector<4x16x128xf32>
    %cst = arith.constant dense<0.000000e+00> : vector<4x16x128xf32>
    %5 = tpu.matmul %3, %4, %cst {dimension_numbers = #tpu.dot_dimension_numbers<[2], [1], [1], [2], [0, 0, 0, 1, 1, 2], [0], [0]>} : vector<4x16x16xf32>, vector<4x16x128xf32>, vector<4x16x128xf32> -> vector<4x16x128xf32>
    %c0_6 = arith.constant 0 : index
    %c0_7 = arith.constant 0 : index
    %c0_8 = arith.constant 0 : index
    %6 = vector.load %arg4[%c0_6, %c0_7, %c0_8] : memref<4x16x128xf32, #tpu.memory_space<vmem>>, vector<4x16x128xf32>
    tpu.vector_store %arg4[%c0_6, %c0_7, %c0_8], %5 {strides = array<i32>} : memref<4x16x128xf32, #tpu.memory_space<vmem>>, vector<4x16x128xf32>,
    return
  }
  func.func @transform_0(%arg0: i32, %arg1: i32) -> (i32, i32, i32) {
    %c0_i32 = arith.constant 0 : i32
    %c0_i32_0 = arith.constant 0 : i32
    %c0_i32_1 = arith.constant 0 : i32
    return %arg0, %c0_i32, %c0_i32_0 : i32, i32, i32
  }
  func.func @transform_1(%arg0: i32, %arg1: i32) -> (i32, i32, i32) {
    %c0_i32 = arith.constant 0 : i32
    %c0_i32_0 = arith.constant 0 : i32
    return %arg0, %c0_i32, %arg1 : i32, i32, i32
  }
  func.func @transform_2(%arg0: i32, %arg1: i32) -> (i32, i32, i32) {
    %c0_i32 = arith.constant 0 : i32
    %c0_i32_0 = arith.constant 0 : i32
    return %arg0, %c0_i32, %arg1 : i32, i32, i32
  }
}

</mosaic_0001>

<llo_original>
// kernel: tpu_custom_call.1
$region0: #{tpu_custom_call.1}
  #allocation0 [shape = 'u32[]', space=smem, size = 0x4, offset = 0x4, fixed_abs, tag = 'smem constant byte address 0x4 - core index']
  #allocation1 [shape = 'u32[72,128]{1,0:T(1,128)}', space=vmem, size = 0x9000, scoped, tag = 'internal scratch']
  #allocation2 [shape = 'f32[4,16,16]{2,1,0:T(8,128)}', space=vmem, size = 0x8000, scoped, tag = 'scratch operand']
  %s0 = inlined_call_operand.hbm [shape: f32[4,16,16], index: 0, kind: input, shape index: {}]
  %s1 = inlined_call_operand.hbm [shape: f32[4,16,128], index: 1, kind: input, shape index: {}]
  %s2 = inlined_call_operand.hbm [shape: f32[4,16,128], index: 2, kind: output, shape index: {}]
  %s3 = sld [smem:[#allocation0]]
  $region37: #{tpu_custom_call.1} parent=0
    _
  %s5 = ssub.s32 1, %s3
  %s6 = scalar_select 0, %s5, %s3
  $region1: #{tpu_custom_call.1} parent=0
    #allocation3 [shape = 'u8[32768]{0}', space=vmem, size = 0x8000, scoped, tag = 'input window, operand 0, single buffered']
    #allocation4 [shape = 's32[1]{0}', space=sflag, size = 0x4, scoped, tag = 'scoped memory for tpu_custom_call.1']
    #allocation5 [shape = 's32[1]{0}', space=sflag, size = 0x4, scoped, tag = 'scoped memory for tpu_custom_call.1']
    #allocation6 [shape = 'u8[32768]{0}', space=vmem, size = 0x8000, scoped, tag = 'input window, operand 1, single buffered']
    #allocation7 [shape = 's32[1]{0}', space=sflag, size = 0x4, scoped, tag = 'scoped memory for tpu_custom_call.1']
    #allocation8 [shape = 'u8[32768]{0}', space=vmem, size = 0x8000, scoped, tag = 'output window, operand 0, single buffered']
    %7 = vsyncpa [#allocation4], 0
    %8 = vsyncpa [#allocation7], 0
    %9 = vsyncpa [#allocation5], 0
    // Predicated region
    $region2: #{tpu_custom_call.1} parent=1 // pred_check
      _
    $region3: #{tpu_custom_call.1} parent=1 // pred_check_branch
      %11 = sbr.rel (0) target = $region5
    $region4: #{tpu_custom_call.1} parent=1 // pred_region
      %13 = vsyncadd [#allocation4], 0
      %s14 = sshll.u32 %s0, 4
      %s15 = int_to_ptr.hbm [resolvable:$true] %s14
      %s16 = sshll.u32 [#allocation3], 4
      %s17 = int_to_ptr.vmem [resolvable:$true] %s16
      %22 = dma.hbm_to_vmem [thread:$0]  %s15, 1024, %s17, [#allocation4], 128, 128, 8
    $region5: #{tpu_custom_call.1} parent=1 // pred_fallthru
      _
    // Predicated region
    $region6: #{tpu_custom_call.1} parent=1 // pred_check
      _
    $region7: #{tpu_custom_call.1} parent=1 // pred_check_branch
      %24 = sbr.rel (0) target = $region9
    $region8: #{tpu_custom_call.1} parent=1 // pred_region
      %26 = vsyncadd [#allocation7], 0
      %s27 = sshll.u32 %s1, 4
      %s28 = int_to_ptr.hbm [resolvable:$true] %s27
      %s29 = sshll.u32 [#allocation6], 4
      %s30 = int_to_ptr.vmem [resolvable:$true] %s29
      %35 = dma.hbm_to_vmem [thread:$0]  %s28, 1024, %s30, [#allocation7], 128, 128, 8
    $region9: #{tpu_custom_call.1} parent=1 // pred_fallthru
      _
    // Predicated region
    $region10: #{tpu_custom_call.1} parent=1 // pred_check
      _
    $region11: #{tpu_custom_call.1} parent=1 // pred_check_branch
      %37 = sbr.rel (0) target = $region13
    $region12: #{tpu_custom_call.1} parent=1 // pred_region
      %39 = dma.done [#allocation4], 1024
    $region13: #{tpu_custom_call.1} parent=1 // pred_fallthru
      _
    // Predicated region
    $region14: #{tpu_custom_call.1} parent=1 // pred_check
      _
    $region15: #{tpu_custom_call.1} parent=1 // pred_check_branch
      %41 = sbr.rel (0) target = $region17
    $region16: #{tpu_custom_call.1} parent=1 // pred_region
      %43 = dma.done [#allocation7], 1024
    $region17: #{tpu_custom_call.1} parent=1 // pred_fallthru
      _
    %p44 = scmp.eq.s32.totalorder 0, 0
    // Predicated region
    $region18: #{tpu_custom_call.1} parent=1 // pred_check
      %p45 = pneg %p44
    $region19: #{tpu_custom_call.1} parent=1 // pred_check_branch
      %47 = sbr.rel (%p45) target = $region21
    $region20: #{tpu_custom_call.1} parent=1 // pred_region
      %v48 = vld [vmem:[#allocation3] sm:$0xff]
      %v49 = vld [vmem:[#allocation3 + $0x8] sm:$0xff]
      %v50 = vld [vmem:[#allocation3 + $0x10] sm:$0xff]
      %v51 = vld [vmem:[#allocation3 + $0x18] sm:$0xff]
      %v52 = vld [vmem:[#allocation3 + $0x20] sm:$0xff]
      %v53 = vld [vmem:[#allocation3 + $0x28] sm:$0xff]
      %v54 = vld [vmem:[#allocation3 + $0x30] sm:$0xff]
      %v55 = vld [vmem:[#allocation3 + $0x38] sm:$0xff]
      loop: start=0, step=1, limit=20
      $region22: #{tpu_custom_call.1} parent=20 // loop_pre_header
        _
      $region23: #{tpu_custom_call.1} parent=20 // loop_header
        %s57 = sphi 0, %s61
        %p58 = scmp.ge.s32.totalorder %s57, 20
        %v62 = vphi %v48, %v283
        %v63 = vphi %v49, %v284
        %v64 = vphi %v50, %v285
        %v65 = vphi %v51, %v286
        %v66 = vphi %v52, %v287
        %v67 = vphi %v53, %v288
        %v68 = vphi %v54, %v289
        %v69 = vphi %v55, %v290
      $region24: #{tpu_custom_call.1} parent=20 // loop_header_branch
        %60 = sbr.rel (%p58) target = $region28
      $region25: #{tpu_custom_call.1} parent=20 // loop_body
        %vm70 = vcmask 130048
        %v71 = vsel %vm70, %v62, -inf
        %v72 = vsel %vm70, %v63, -inf
        %v73 = vmax.f32 %v71, %v72
        %v74 = vrot.slane %v73, 4
        %v75 = vmax.f32 %v73, %v74
        %v76 = vrot.slane %v75, 2
        %v77 = vmax.f32 %v75, %v76
        %v78 = vrot.slane %v77, 1
        %v79 = vmax.f32 %v77, %v78
        %v80 = vsel %vm70, %v64, -inf
        %v81 = vsel %vm70, %v65, -inf
        %v82 = vmax.f32 %v80, %v81
        %v83 = vrot.slane %v82, 4
        %v84 = vmax.f32 %v82, %v83
        %v85 = vrot.slane %v84, 2
        %v86 = vmax.f32 %v84, %v85
        %v87 = vrot.slane %v86, 1
        %v88 = vmax.f32 %v86, %v87
        %v89 = vsel %vm70, %v66, -inf
        %v90 = vsel %vm70, %v67, -inf
        %v91 = vmax.f32 %v89, %v90
        %v92 = vrot.slane %v91, 4
        %v93 = vmax.f32 %v91, %v92
        %v94 = vrot.slane %v93, 2
        %v95 = vmax.f32 %v93, %v94
        %v96 = vrot.slane %v95, 1
        %v97 = vmax.f32 %v95, %v96
        %v98 = vsel %vm70, %v68, -inf
        %v99 = vsel %vm70, %v69, -inf
        %v100 = vmax.f32 %v98, %v99
        %v101 = vrot.slane %v100, 4
        %v102 = vmax.f32 %v100, %v101
        %v103 = vrot.slane %v102, 2
        %v104 = vmax.f32 %v102, %v103
        %v105 = vrot.slane %v104, 1
        %v106 = vmax.f32 %v104, %v105
        %v107 = vsub.f32 %v62, %v79
        %v108 = vsub.f32 %v63, %v79
        %v109 = vsub.f32 %v64, %v88
        %v110 = vsub.f32 %v65, %v88
        %v111 = vsub.f32 %v66, %v97
        %v112 = vsub.f32 %v67, %v97
        %v113 = vsub.f32 %v68, %v106
        %v114 = vsub.f32 %v69, %v106
        %v115 = vmul.f32 %v107, 1.442695
        %v116 = vpow.pop %v115
        %v117 = vmul.f32 %v108, 1.442695
        %v118 = vpow.pop %v117
        %v119 = vmul.f32 %v109, 1.442695
        %v120 = vpow.pop %v119
        %v121 = vmul.f32 %v110, 1.442695
        %v122 = vpow.pop %v121
        %v123 = vmul.f32 %v111, 1.442695
        %v124 = vpow.pop %v123
        %v125 = vmul.f32 %v112, 1.442695
        %v126 = vpow.pop %v125
        %v127 = vmul.f32 %v113, 1.442695
        %v128 = vpow.pop %v127
        %v129 = vmul.f32 %v114, 1.442695
        %v130 = vpow.pop %v129
        %v131 = vsel %vm70, %v116, 0.0
        %v132 = vsel %vm70, %v118, 0.0
        %v133 = vadd.f32 %v131, %v132
        %v134 = vrot.slane %v133, 4
        %v135 = vadd.f32 %v133, %v134
        %v136 = vrot.slane %v135, 2
        %v137 = vadd.f32 %v135, %v136
        %v138 = vrot.slane %v137, 1
        %v139 = vadd.f32 %v137, %v138
        %v140 = vsel %vm70, %v120, 0.0
        %v141 = vsel %vm70, %v122, 0.0
        %v142 = vadd.f32 %v140, %v141
        %v143 = vrot.slane %v142, 4
        %v144 = vadd.f32 %v142, %v143
        %v145 = vrot.slane %v144, 2
        %v146 = vadd.f32 %v144, %v145
        %v147 = vrot.slane %v146, 1
        %v148 = vadd.f32 %v146, %v147
        %v149 = vsel %vm70, %v124, 0.0
        %v150 = vsel %vm70, %v126, 0.0
        %v151 = vadd.f32 %v149, %v150
        %v152 = vrot.slane %v151, 4
        %v153 = vadd.f32 %v151, %v152
        %v154 = vrot.slane %v153, 2
        %v155 = vadd.f32 %v153, %v154
        %v156 = vrot.slane %v155, 1
        %v157 = vadd.f32 %v155, %v156
        %v158 = vsel %vm70, %v128, 0.0
        %v159 = vsel %vm70, %v130, 0.0
        %v160 = vadd.f32 %v158, %v159
        %v161 = vrot.slane %v160, 4
        %v162 = vadd.f32 %v160, %v161
        %v163 = vrot.slane %v162, 2
        %v164 = vadd.f32 %v162, %v163
        %v165 = vrot.slane %v164, 1
        %v166 = vadd.f32 %v164, %v165
        %v167 = vlog2.pop %v139
        %v168 = vmul.f32 %v167, 0.6931472
        %v169 = vlog2.pop %v148
        %v170 = vmul.f32 %v169, 0.6931472
        %v171 = vlog2.pop %v157
        %v172 = vmul.f32 %v171, 0.6931472
        %v173 = vlog2.pop %v166
        %v174 = vmul.f32 %v173, 0.6931472
        %v175 = vadd.f32 %v79, %v168
        %v176 = vadd.f32 %v88, %v170
        %v177 = vadd.f32 %v97, %v172
        %v178 = vadd.f32 %v106, %v174
        %v179 = vsub.f32 %v62, %v175
        %v180 = vsub.f32 %v63, %v175
        %v181 = vsub.f32 %v64, %v176
        %v182 = vsub.f32 %v65, %v176
        %v183 = vsub.f32 %v66, %v177
        %v184 = vsub.f32 %v67, %v177
        %v185 = vsub.f32 %v68, %v178
        %v186 = vsub.f32 %v69, %v178
        %v187 = vsel %vm70, %v179, -inf
        %188 = vmax.xlane.f32.xlu0 %v187
        %v189 = vpop.xlane.xlu0 %188
        %v190 = vsel %vm70, %v180, -inf
        %191 = vmax.xlane.f32.xlu0 %v190
        %v192 = vpop.xlane.xlu0 %191
        %v193 = vsel %vm70, %v181, -inf
        %194 = vmax.xlane.f32.xlu0 %v193
        %v195 = vpop.xlane.xlu0 %194
        %v196 = vsel %vm70, %v182, -inf
        %197 = vmax.xlane.f32.xlu0 %v196
        %v198 = vpop.xlane.xlu0 %197
        %v199 = vsel %vm70, %v183, -inf
        %200 = vmax.xlane.f32.xlu0 %v199
        %v201 = vpop.xlane.xlu0 %200
        %v202 = vsel %vm70, %v184, -inf
        %203 = vmax.xlane.f32.xlu0 %v202
        %v204 = vpop.xlane.xlu0 %203
        %v205 = vsel %vm70, %v185, -inf
        %206 = vmax.xlane.f32.xlu0 %v205
        %v207 = vpop.xlane.xlu0 %206
        %v208 = vsel %vm70, %v186, -inf
        %209 = vmax.xlane.f32.xlu0 %v208
        %v210 = vpop.xlane.xlu0 %209
        %v211 = vsub.f32 %v179, %v189
        %v212 = vsub.f32 %v180, %v192
        %v213 = vsub.f32 %v181, %v195
        %v214 = vsub.f32 %v182, %v198
        %v215 = vsub.f32 %v183, %v201
        %v216 = vsub.f32 %v184, %v204
        %v217 = vsub.f32 %v185, %v207
        %v218 = vsub.f32 %v186, %v210
        %v219 = vmul.f32 %v211, 1.442695
        %v220 = vpow.pop %v219
        %v221 = vmul.f32 %v212, 1.442695
        %v222 = vpow.pop %v221
        %v223 = vmul.f32 %v213, 1.442695
        %v224 = vpow.pop %v223
        %v225 = vmul.f32 %v214, 1.442695
        %v226 = vpow.pop %v225
        %v227 = vmul.f32 %v215, 1.442695
        %v228 = vpow.pop %v227
        %v229 = vmul.f32 %v216, 1.442695
        %v230 = vpow.pop %v229
        %v231 = vmul.f32 %v217, 1.442695
        %v232 = vpow.pop %v231
        %v233 = vmul.f32 %v218, 1.442695
        %v234 = vpow.pop %v233
        %v235 = vsel %vm70, %v220, 0.0
        %236 = vadd.xlane.f32.xlu0 %v235
        %v237 = vpop.xlane.xlu0 %236
        %v238 = vsel %vm70, %v222, 0.0
        %239 = vadd.xlane.f32.xlu0 %v238
        %v240 = vpop.xlane.xlu0 %239
        %v241 = vsel %vm70, %v224, 0.0
        %242 = vadd.xlane.f32.xlu0 %v241
        %v243 = vpop.xlane.xlu0 %242
        %v244 = vsel %vm70, %v226, 0.0
        %245 = vadd.xlane.f32.xlu0 %v244
        %v246 = vpop.xlane.xlu0 %245
        %v247 = vsel %vm70, %v228, 0.0
        %248 = vadd.xlane.f32.xlu0 %v247
        %v249 = vpop.xlane.xlu0 %248
        %v250 = vsel %vm70, %v230, 0.0
        %251 = vadd.xlane.f32.xlu0 %v250
        %v252 = vpop.xlane.xlu0 %251
        %v253 = vsel %vm70, %v232, 0.0
        %254 = vadd.xlane.f32.xlu0 %v253
        %v255 = vpop.xlane.xlu0 %254
        %v256 = vsel %vm70, %v234, 0.0
        %257 = vadd.xlane.f32.xlu0 %v256
        %v258 = vpop.xlane.xlu0 %257
        %v259 = vlog2.pop %v237
        %v260 = vmul.f32 %v259, 0.6931472
        %v261 = vlog2.pop %v240
        %v262 = vmul.f32 %v261, 0.6931472
        %v263 = vlog2.pop %v243
        %v264 = vmul.f32 %v263, 0.6931472
        %v265 = vlog2.pop %v246
        %v266 = vmul.f32 %v265, 0.6931472
        %v267 = vlog2.pop %v249
        %v268 = vmul.f32 %v267, 0.6931472
        %v269 = vlog2.pop %v252
        %v270 = vmul.f32 %v269, 0.6931472
        %v271 = vlog2.pop %v255
        %v272 = vmul.f32 %v271, 0.6931472
        %v273 = vlog2.pop %v258
        %v274 = vmul.f32 %v273, 0.6931472
        %v275 = vadd.f32 %v189, %v260
        %v276 = vadd.f32 %v192, %v262
        %v277 = vadd.f32 %v195, %v264
        %v278 = vadd.f32 %v198, %v266
        %v279 = vadd.f32 %v201, %v268
        %v280 = vadd.f32 %v204, %v270
        %v281 = vadd.f32 %v207, %v272
        %v282 = vadd.f32 %v210, %v274
        %v283 = vsub.f32 %v179, %v275
        %v284 = vsub.f32 %v180, %v276
        %v285 = vsub.f32 %v181, %v277
        %v286 = vsub.f32 %v182, %v278
        %v287 = vsub.f32 %v183, %v279
        %v288 = vsub.f32 %v184, %v280
        %v289 = vsub.f32 %v185, %v281
        %v290 = vsub.f32 %v186, %v282
      $region26: #{tpu_custom_call.1} parent=20 // loop_footer
        %s61 = sadd.s32 1, %s57
      $region27: #{tpu_custom_call.1} parent=20 // loop_footer_branch
        %56 = sbr.rel target = $region23
      $region28: #{tpu_custom_call.1} parent=20 // loop_exit
        _
      %v291 = vmul.f32 %v62, 1.442695
      %v292 = vpow.pop %v291
      %v293 = vmul.f32 %v63, 1.442695
      %v294 = vpow.pop %v293
      %v295 = vmul.f32 %v64, 1.442695
      %v296 = vpow.pop %v295
      %v297 = vmul.f32 %v65, 1.442695
      %v298 = vpow.pop %v297
      %v299 = vmul.f32 %v66, 1.442695
      %v300 = vpow.pop %v299
      %v301 = vmul.f32 %v67, 1.442695
      %v302 = vpow.pop %v301
      %v303 = vmul.f32 %v68, 1.442695
      %v304 = vpow.pop %v303
      %v305 = vmul.f32 %v69, 1.442695
      %v306 = vpow.pop %v305
      %vm307 = vcmask 130048
      %308 = vst.msk [vmem:[#allocation2] sm:$0xff] %vm307, %v292
      %309 = vst.msk [vmem:[#allocation2 + $0x8] sm:$0xff] %vm307, %v294
      %310 = vst.msk [vmem:[#allocation2 + $0x10] sm:$0xff] %vm307, %v296
      %311 = vst.msk [vmem:[#allocation2 + $0x18] sm:$0xff] %vm307, %v298
      %312 = vst.msk [vmem:[#allocation2 + $0x20] sm:$0xff] %vm307, %v300
      %313 = vst.msk [vmem:[#allocation2 + $0x28] sm:$0xff] %vm307, %v302
      %314 = vst.msk [vmem:[#allocation2 + $0x30] sm:$0xff] %vm307, %v304
      %315 = vst.msk [vmem:[#allocation2 + $0x38] sm:$0xff] %vm307, %v306
    $region21: #{tpu_custom_call.1} parent=1 // pred_fallthru
      _
    %v316 = vld [vmem:[#allocation2] sm:$0xff]
    %v317 = vld [vmem:[#allocation2 + $0x8] sm:$0xff]
    %v318 = vld [vmem:[#allocation2 + $0x10] sm:$0xff]
    %v319 = vld [vmem:[#allocation2 + $0x18] sm:$0xff]
    %v320 = vld [vmem:[#allocation2 + $0x20] sm:$0xff]
    %v321 = vld [vmem:[#allocation2 + $0x28] sm:$0xff]
    %v322 = vld [vmem:[#allocation2 + $0x30] sm:$0xff]
    %v323 = vld [vmem:[#allocation2 + $0x38] sm:$0xff]
    %v324 = vld [vmem:[#allocation6] sm:$0xff]
    %v325 = vld [vmem:[#allocation6 + $0x8] sm:$0xff]
    %v326 = vld [vmem:[#allocation6 + $0x10] sm:$0xff]
    %v327 = vld [vmem:[#allocation6 + $0x18] sm:$0xff]
    %v328 = vld [vmem:[#allocation6 + $0x20] sm:$0xff]
    %v329 = vld [vmem:[#allocation6 + $0x28] sm:$0xff]
    %v330 = vld [vmem:[#allocation6 + $0x30] sm:$0xff]
    %v331 = vld [vmem:[#allocation6 + $0x38] sm:$0xff]
    %vm332 = vcmask 130048
    %v334 = vsel %vm332, %v316, 0
    %v337 = vsel %vm332, %v317, 0
    %339 = vmatpush.msra.mxu0 0.0
    %340 = vmatpush.msra.mxu0 0.0
    %341 = vmatpush.msra.mxu0 0.0
    %342 = vmatpush.msra.mxu0 0.0
    %343 = vmatpush.msra.mxu0 0.0
    %344 = vmatpush.msra.mxu0 0.0
    %345 = vmatpush.msra.mxu0 0.0
    %346 = vmatpush.msra.mxu0 0.0
    %347 = vmatpush.msra.mxu0 0.0
    %348 = vmatpush.msra.mxu0 0.0
    %349 = vmatpush.msra.mxu0 0.0
    %350 = vmatpush.msra.mxu0 0.0
    %351 = vmatpush.msra.mxu0 0.0
    %352 = vmatpush.msra.mxu0 0.0
    %353 = vmatpush.msra.mxu0 %v325
    %354 = vmatpush.msra.mxu0 %v324
    %355 = vmatmul.f32.gmra.mxu0 %v334
    %v356 = vpop.f32.mrf.mxu0
    %v357 = vadd.f32 0.0, %v356
    %358 = vmatmul.f32.gmra.mxu0 %v337
    %v359 = vpop.f32.mrf.mxu0
    %v360 = vadd.f32 0.0, %v359
    %361 = vdwg.mxu0
    %v363 = vsel %vm332, %v318, 0
    %v366 = vsel %vm332, %v319, 0
    %368 = vmatpush.msra.mxu0 0.0
    %369 = vmatpush.msra.mxu0 0.0
    %370 = vmatpush.msra.mxu0 0.0
    %371 = vmatpush.msra.mxu0 0.0
    %372 = vmatpush.msra.mxu0 0.0
    %373 = vmatpush.msra.mxu0 0.0
    %374 = vmatpush.msra.mxu0 0.0
    %375 = vmatpush.msra.mxu0 0.0
    %376 = vmatpush.msra.mxu0 0.0
    %377 = vmatpush.msra.mxu0 0.0
    %378 = vmatpush.msra.mxu0 0.0
    %379 = vmatpush.msra.mxu0 0.0
    %380 = vmatpush.msra.mxu0 0.0
    %381 = vmatpush.msra.mxu0 0.0
    %382 = vmatpush.msra.mxu0 %v327
    %383 = vmatpush.msra.mxu0 %v326
    %384 = vmatmul.f32.gmra.mxu0 %v363
    %v385 = vpop.f32.mrf.mxu0
    %v386 = vadd.f32 0.0, %v385
    %387 = vmatmul.f32.gmra.mxu0 %v366
    %v388 = vpop.f32.mrf.mxu0
    %v389 = vadd.f32 0.0, %v388
    %390 = vdwg.mxu0
    %v392 = vsel %vm332, %v320, 0
    %v395 = vsel %vm332, %v321, 0
    %397 = vmatpush.msra.mxu0 0.0
    %398 = vmatpush.msra.mxu0 0.0
    %399 = vmatpush.msra.mxu0 0.0
    %400 = vmatpush.msra.mxu0 0.0
    %401 = vmatpush.msra.mxu0 0.0
    %402 = vmatpush.msra.mxu0 0.0
    %403 = vmatpush.msra.mxu0 0.0
    %404 = vmatpush.msra.mxu0 0.0
    %405 = vmatpush.msra.mxu0 0.0
    %406 = vmatpush.msra.mxu0 0.0
    %407 = vmatpush.msra.mxu0 0.0
    %408 = vmatpush.msra.mxu0 0.0
    %409 = vmatpush.msra.mxu0 0.0
    %410 = vmatpush.msra.mxu0 0.0
    %411 = vmatpush.msra.mxu0 %v329
    %412 = vmatpush.msra.mxu0 %v328
    %413 = vmatmul.f32.gmra.mxu0 %v392
    %v414 = vpop.f32.mrf.mxu0
    %v415 = vadd.f32 0.0, %v414
    %416 = vmatmul.f32.gmra.mxu0 %v395
    %v417 = vpop.f32.mrf.mxu0
    %v418 = vadd.f32 0.0, %v417
    %419 = vdwg.mxu0
    %v421 = vsel %vm332, %v322, 0
    %v424 = vsel %vm332, %v323, 0
    %426 = vmatpush.msra.mxu0 0.0
    %427 = vmatpush.msra.mxu0 0.0
    %428 = vmatpush.msra.mxu0 0.0
    %429 = vmatpush.msra.mxu0 0.0
    %430 = vmatpush.msra.mxu0 0.0
    %431 = vmatpush.msra.mxu0 0.0
    %432 = vmatpush.msra.mxu0 0.0
    %433 = vmatpush.msra.mxu0 0.0
    %434 = vmatpush.msra.mxu0 0.0
    %435 = vmatpush.msra.mxu0 0.0
    %436 = vmatpush.msra.mxu0 0.0
    %437 = vmatpush.msra.mxu0 0.0
    %438 = vmatpush.msra.mxu0 0.0
    %439 = vmatpush.msra.mxu0 0.0
    %440 = vmatpush.msra.mxu0 %v331
    %441 = vmatpush.msra.mxu0 %v330
    %442 = vmatmul.f32.gmra.mxu0 %v421
    %v443 = vpop.f32.mrf.mxu0
    %v444 = vadd.f32 0.0, %v443
    %445 = vmatmul.f32.gmra.mxu0 %v424
    %v446 = vpop.f32.mrf.mxu0
    %v447 = vadd.f32 0.0, %v446
    %448 = vdwg.mxu0
    %449 = vst [vmem:[#allocation8] sm:$0xff] %v357
    %450 = vst [vmem:[#allocation8 + $0x8] sm:$0xff] %v360
    %451 = vst [vmem:[#allocation8 + $0x10] sm:$0xff] %v386
    %452 = vst [vmem:[#allocation8 + $0x18] sm:$0xff] %v389
    %453 = vst [vmem:[#allocation8 + $0x20] sm:$0xff] %v415
    %454 = vst [vmem:[#allocation8 + $0x28] sm:$0xff] %v418
    %455 = vst [vmem:[#allocation8 + $0x30] sm:$0xff] %v444
    %456 = vst [vmem:[#allocation8 + $0x38] sm:$0xff] %v447
    // Predicated region
    $region29: #{tpu_custom_call.1} parent=1 // pred_check
      _
    $region30: #{tpu_custom_call.1} parent=1 // pred_check_branch
      %458 = sbr.rel (0) target = $region32
    $region31: #{tpu_custom_call.1} parent=1 // pred_region
      %460 = vsyncadd [#allocation5], 0
      %s461 = sshll.u32 [#allocation8], 4
      %s462 = int_to_ptr.vmem [resolvable:$true] %s461
      %s463 = sshll.u32 %s2, 4
      %s464 = int_to_ptr.hbm [resolvable:$true] %s463
      %469 = dma.vmem_to_hbm [thread:$0]  %s462, 1024, %s464, [#allocation5], 128, 128, 8
    $region32: #{tpu_custom_call.1} parent=1 // pred_fallthru
      _
    // Predicated region
    $region33: #{tpu_custom_call.1} parent=1 // pred_check
      _
    $region34: #{tpu_custom_call.1} parent=1 // pred_check_branch
      %471 = sbr.rel (0) target = $region36
    $region35: #{tpu_custom_call.1} parent=1 // pred_region
      %473 = dma.done [#allocation5], 1024
    $region36: #{tpu_custom_call.1} parent=1 // pred_fallthru
      _
    %474 = vsyncpa [#allocation4], 1
    %475 = vsyncpa [#allocation7], 1
    %476 = vsyncpa [#allocation5], 1

</llo_original>
